<compile_context>
chip_gen: v5e
topology: v5e:2x2
jax: 0.10.0
libtpu: 0.0.40
codegen_flags: <defaults>
</compile_context>

<pallas_src>
import jax
import jax.numpy as jnp
from jax.experimental import pallas as pl
from jax.experimental.pallas import tpu as pltpu

LANE = 128      # TPU lane width (last dim)
SUBLANE = 8     # TPU sublane width (second-to-last dim, f32)


def _round_up(x, m):
    return (x + m - 1) // m * m


def _pad2d(a, rows, cols):
    r, c = a.shape
    return jnp.pad(a, ((0, rows - r), (0, cols - c)))


def ensemble_kernel(
    hcls_ref, feat_ref,
    wp_ref, bp_ref,
    w1_ref, b1_ref,
    w2_ref, b2_ref,
    wl_r_ref, wl_m_ref, bl_ref,
    out_ref,
):
    # ---- RoBERTa pooler: tanh(h_cls @ Wp + bp) (bf16 MXU operands, f32 accum) ----
    pooler = jnp.tanh(
        jnp.dot(hcls_ref[...], wp_ref[...], preferred_element_type=jnp.float32)
        + bp_ref[...]
    )

    # ---- MLP: Linear -> ReLU -> Linear -------------------------------------------
    h = jnp.maximum(
        jnp.dot(feat_ref[...], w1_ref[...], preferred_element_type=jnp.float32)
        + b1_ref[...],
        0.0,
    )
    mlp_out = (
        jnp.dot(h.astype(w2_ref.dtype), w2_ref[...], preferred_element_type=jnp.float32)
        + b2_ref[...]
    )

    # ---- logistic head over concat([pooler, mlp_out], axis=1) ---------------------
    # concat fused: [P | M] @ [[Wl_r],[Wl_m]] == P @ Wl_r + M @ Wl_m
    logits = (
        jnp.dot(pooler.astype(wl_r_ref.dtype), wl_r_ref[...],
                preferred_element_type=jnp.float32)
        + jnp.dot(mlp_out.astype(wl_m_ref.dtype), wl_m_ref[...],
                  preferred_element_type=jnp.float32)
        + bl_ref[...]
    )
    out_ref[...] = logits.astype(out_ref.dtype)


def ensemble_forward(h_cls, features, params, *, n_classes=2, tb_max=256,
                     mxu_dtype=jnp.bfloat16):
    """params = (wp, bp, w1, b1, w2, b2, wl, bl), weights stored (in, out), biases 1D."""
    wp, bp, w1, b1, w2, b2, wl, bl = params
    B, Hr = h_cls.shape
    F = features.shape[1]
    H = w1.shape[1]
    O = w2.shape[1]
    assert wl.shape == (Hr + O, n_classes)

    # ---- lane-dense padded dims (multiples of 128) ---------------------------------
    Hr_p = _round_up(Hr, LANE)
    F_p = _round_up(F, LANE)
    H_p = _round_up(H, LANE)
    O_p = _round_up(O, LANE)
    N_p = _round_up(n_classes, LANE)

    # ---- batch tiling: sublane-aligned tile, capped for v7x's 64 MiB VMEM ----------
    TB = min(tb_max, _round_up(B, SUBLANE))
    B_p = _round_up(B, TB)

    # ---- zero-pad activations (extra rows/cols discarded at the end) ---------------
    hcls_p = _pad2d(h_cls.astype(jnp.float32), B_p, Hr_p).astype(mxu_dtype)
    feat_p = _pad2d(features.astype(jnp.float32), B_p, F_p).astype(mxu_dtype)

    # ---- zero-pad weights/biases (zero padding keeps the math exact) ---------------
    wp_p = _pad2d(wp, Hr_p, Hr_p).astype(mxu_dtype)
    bp_p = _pad2d(bp.reshape(1, -1).astype(jnp.float32), 1, Hr_p)
    w1_p = _pad2d(w1, F_p, H_p).astype(mxu_dtype)
    b1_p = _pad2d(b1.reshape(1, -1).astype(jnp.float32), 1, H_p)
    w2_p = _pad2d(w2, H_p, O_p).astype(mxu_dtype)
    b2_p = _pad2d(b2.reshape(1, -1).astype(jnp.float32), 1, O_p)
    wl_r = _pad2d(wl[:Hr, :], Hr_p, N_p).astype(mxu_dtype)
    wl_m = _pad2d(wl[Hr:, :], O_p, N_p).astype(mxu_dtype)
    bl_p = _pad2d(bl.reshape(1, -1).astype(jnp.float32), 1, N_p)

    grid = (B_p // TB,)

    def batch_spec(cols):
        return pl.BlockSpec((TB, cols), lambda i: (i, 0))

    def resident_spec(shape):
        # constant block index -> weight stays VMEM-resident across grid steps
        return pl.BlockSpec(shape, lambda i: (0, 0))

    in_specs = [
        batch_spec(Hr_p),                 # h_cls tile
        batch_spec(F_p),                  # features tile
        resident_spec((Hr_p, Hr_p)),      # Wp
        resident_spec((1, Hr_p)),         # bp
        resident_spec((F_p, H_p)),        # W1
        resident_spec((1, H_p)),          # b1
        resident_spec((H_p, O_p)),        # W2
        resident_spec((1, O_p)),          # b2
        resident_spec((Hr_p, N_p)),       # Wl (pooler rows)
        resident_spec((O_p, N_p)),        # Wl (mlp rows)
        resident_spec((1, N_p)),          # bl
    ]
    out_spec = pl.BlockSpec((TB, N_p), lambda i: (i, 0))   # lane-dense output store

    # ---- advisory cost estimate for XLA scheduling ---------------------------------
    flops = 2 * B_p * (Hr_p * Hr_p + F_p * H_p + H_p * O_p + (Hr_p + O_p) * N_p)
    itemsize = jnp.dtype(mxu_dtype).itemsize
    bytes_in = (
        (hcls_p.size + feat_p.size + wp_p.size + w1_p.size + w2_p.size
         + wl_r.size + wl_m.size) * itemsize
        + (bp_p.size + b1_p.size + b2_p.size + bl_p.size) * 4
    )
    bytes_out = B_p * N_p * 4
    cost = pl.CostEstimate(
        flops=int(flops),
        transcendentals=int(B_p * Hr_p),          # tanh
        bytes_accessed=int(bytes_in + bytes_out),
    )

    # ---- explicit VMEM budget (resident weights + double-buffered tiles), capped
    #      at v7x's 64 MiB physical VMEM ----------------------------------------------
    weight_bytes = (
        (wp_p.size + w1_p.size + w2_p.size + wl_r.size + wl_m.size) * itemsize
        + (bp_p.size + b1_p.size + b2_p.size + bl_p.size) * 4
    )
    tile_bytes = 2 * (TB * (Hr_p + F_p) * itemsize + TB * N_p * 4)
    vmem_limit = int(min(64 * 2**20, max(16 * 2**20, 2 * (weight_bytes + tile_bytes))))

    out_p = pl.pallas_call(
        ensemble_kernel,
        out_shape=jax.ShapeDtypeStruct((B_p, N_p), jnp.float32),
        grid=grid,
        in_specs=in_specs,
        out_specs=out_spec,
        compiler_params=pltpu.CompilerParams(
            dimension_semantics=("parallel",),     # lets v7x shard batch tiles over 2 TCs
            vmem_limit_bytes=vmem_limit,
        ),
        cost_estimate=cost,
    )(hcls_p, feat_p, wp_p, bp_p, w1_p, b1_p, w2_p, b2_p, wl_r, wl_m, bl_p)

    return out_p[:B, :n_classes]


def make_params(key, input_size, hidden_size, output_size, roberta_hidden, n_classes=2):
    ks = jax.random.split(key, 8)

    def lin(kw, fan_in, fan_out):
        # weight stored (in, out) so the kernel does plain x @ W
        return jax.random.normal(kw, (fan_in, fan_out), jnp.float32) * 0.02

    wp = lin(ks[0], roberta_hidden, roberta_hidden)              # RobertaPooler.dense
    bp = jax.random.normal(ks[1], (roberta_hidden,), jnp.float32) * 0.02
    w1 = lin(ks[2], input_size, hidden_size)                     # mlp[0]
    b1 = jax.random.normal(ks[3], (hidden_size,), jnp.float32) * 0.02
    w2 = lin(ks[4], hidden_size, output_size)                    # mlp[2]
    b2 = jax.random.normal(ks[5], (output_size,), jnp.float32) * 0.02
    wl = lin(ks[6], roberta_hidden + output_size, n_classes)     # logistic
    bl = jax.random.normal(ks[7], (n_classes,), jnp.float32) * 0.02
    return (wp, bp, w1, b1, w2, b2, wl, bl)


def reference_forward_f32(h_cls, features, params):
    wp, bp, w1, b1, w2, b2, wl, bl = params
    pooler = jnp.tanh(h_cls @ wp + bp)
    mlp = jnp.maximum(features @ w1 + b1, 0.0) @ w2 + b2
    cat = jnp.concatenate([pooler, mlp], axis=1)
    return cat @ wl + bl


def reference_forward_bf16(h_cls, features, params):
    # mirrors the kernel's mixed precision: bf16 MXU operands, f32 accumulate/elementwise
    wp, bp, w1, b1, w2, b2, wl, bl = params
    bf = jnp.bfloat16

    def dot(a, b):
        return jnp.dot(a.astype(bf), b.astype(bf), preferred_element_type=jnp.float32)

    pooler = jnp.tanh(dot(h_cls, wp) + bp)
    h = jnp.maximum(dot(features, w1) + b1, 0.0)
    mlp = dot(h, w2) + b2
    Hr = wp.shape[0]
    return dot(pooler, wl[:Hr]) + dot(mlp, wl[Hr:]) + bl


if __name__ == "__main__":
    # TODO(synk): RoBERTa encoder + string featurizer outputs are synthesized inputs here.
    B = 2
    input_size = 16        # featurizer feature dim
    hidden_size = 32       # mlp hidden
    output_size = 8        # mlp output
    roberta_hidden = 32    # stand-in for roberta-base hidden (768) at small scale
    n_classes = 2

    key = jax.random.PRNGKey(0)
    k_p, k_h, k_f = jax.random.split(key, 3)

    params = make_params(k_p, input_size, hidden_size, output_size, roberta_hidden, n_classes)
    h_cls = jax.random.normal(k_h, (B, roberta_hidden), jnp.float32)
    features = jax.random.normal(k_f, (B, input_size), jnp.float32)

    logits = ensemble_forward(h_cls, features, params, n_classes=n_classes)
    jax.block_until_ready(logits)

    ref_bf16 = reference_forward_bf16(h_cls, features, params)
    ref_f32 = reference_forward_f32(h_cls, features, params)

    assert logits.shape == (B, n_classes)
    # tight check against the precision-matched reference
    assert jnp.allclose(logits, ref_bf16, atol=2e-3, rtol=2e-3)
    # sanity check against the pure-f32 reference (bf16 rounding tolerance)
    assert jnp.allclose(logits, ref_f32, atol=2e-2, rtol=2e-2)

    print("KERNEL_OK")
</pallas_src>

<mosaic_0001>
module attributes {stable_mosaic.version = 11 : i64} {
  func.func @ensemble_kernel(%arg0: i32, %arg1: memref<8x128xbf16, #tpu.memory_space<vmem>>, %arg2: memref<8x128xbf16, #tpu.memory_space<vmem>>, %arg3: memref<128x128xbf16, #tpu.memory_space<vmem>>, %arg4: memref<1x128xf32, #tpu.memory_space<vmem>>, %arg5: memref<128x128xbf16, #tpu.memory_space<vmem>>, %arg6: memref<1x128xf32, #tpu.memory_space<vmem>>, %arg7: memref<128x128xbf16, #tpu.memory_space<vmem>>, %arg8: memref<1x128xf32, #tpu.memory_space<vmem>>, %arg9: memref<128x128xbf16, #tpu.memory_space<vmem>>, %arg10: memref<128x128xbf16, #tpu.memory_space<vmem>>, %arg11: memref<1x128xf32, #tpu.memory_space<vmem>>, %arg12: memref<8x128xf32, #tpu.memory_space<vmem>>) attributes {dimension_semantics = [#tpu.dimension_semantics<parallel>], iteration_bounds = array<i64: 1>, scalar_prefetch = 0 : i64, scratch_operands = 0 : i64, tpu.core_type = #tpu.core_type<tc>, window_params = [{transform_indices = @transform_0, window_bounds = array<i64: 8, 128>}, {transform_indices = @transform_1, window_bounds = array<i64: 8, 128>}, {pipeline_mode = #tpu.pipeline_mode<synchronous>, transform_indices = @transform_2, window_bounds = array<i64: 128, 128>}, {pipeline_mode = #tpu.pipeline_mode<synchronous>, transform_indices = @transform_3, window_bounds = array<i64: 1, 128>}, {pipeline_mode = #tpu.pipeline_mode<synchronous>, transform_indices = @transform_4, window_bounds = array<i64: 128, 128>}, {pipeline_mode = #tpu.pipeline_mode<synchronous>, transform_indices = @transform_5, window_bounds = array<i64: 1, 128>}, {pipeline_mode = #tpu.pipeline_mode<synchronous>, transform_indices = @transform_6, window_bounds = array<i64: 128, 128>}, {pipeline_mode = #tpu.pipeline_mode<synchronous>, transform_indices = @transform_7, window_bounds = array<i64: 1, 128>}, {pipeline_mode = #tpu.pipeline_mode<synchronous>, transform_indices = @transform_8, window_bounds = array<i64: 128, 128>}, {pipeline_mode = #tpu.pipeline_mode<synchronous>, transform_indices = @transform_9, window_bounds = array<i64: 128, 128>}, {pipeline_mode = #tpu.pipeline_mode<synchronous>, transform_indices = @transform_10, window_bounds = array<i64: 1, 128>}, {transform_indices = @transform_11, window_bounds = array<i64: 8, 128>}]} {
    %c0 = arith.constant 0 : index
    %c0_0 = arith.constant 0 : index
    %0 = vector.load %arg1[%c0, %c0_0] : memref<8x128xbf16, #tpu.memory_space<vmem>>, vector<8x128xbf16>
    %c0_1 = arith.constant 0 : index
    %c0_2 = arith.constant 0 : index
    %1 = vector.load %arg3[%c0_1, %c0_2] : memref<128x128xbf16, #tpu.memory_space<vmem>>, vector<128x128xbf16>
    %cst = arith.constant dense<0.000000e+00> : vector<8x128xf32>
    %2 = tpu.matmul %0, %1, %cst {dimension_numbers = #tpu.dot_dimension_numbers<[1], [0], [0], [1], [0, 0, 1, 1], [], []>} : vector<8x128xbf16>, vector<128x128xbf16>, vector<8x128xf32> -> vector<8x128xf32>
    %c0_3 = arith.constant 0 : index
    %c0_4 = arith.constant 0 : index
    %3 = vector.load %arg4[%c0_3, %c0_4] : memref<1x128xf32, #tpu.memory_space<vmem>>, vector<1x128xf32>
    %4 = vector.broadcast %3 : vector<1x128xf32> to vector<8x128xf32>
    %5 = arith.addf %2, %4 : vector<8x128xf32>
    %6 = math.tanh %5 : vector<8x128xf32>
    %c0_5 = arith.constant 0 : index
    %c0_6 = arith.constant 0 : index
    %7 = vector.load %arg2[%c0_5, %c0_6] : memref<8x128xbf16, #tpu.memory_space<vmem>>, vector<8x128xbf16>
    %c0_7 = arith.constant 0 : index
    %c0_8 = arith.constant 0 : index
    %8 = vector.load %arg5[%c0_7, %c0_8] : memref<128x128xbf16, #tpu.memory_space<vmem>>, vector<128x128xbf16>
    %cst_9 = arith.constant dense<0.000000e+00> : vector<8x128xf32>
    %9 = tpu.matmul %7, %8, %cst_9 {dimension_numbers = #tpu.dot_dimension_numbers<[1], [0], [0], [1], [0, 0, 1, 1], [], []>} : vector<8x128xbf16>, vector<128x128xbf16>, vector<8x128xf32> -> vector<8x128xf32>
    %c0_10 = arith.constant 0 : index
    %c0_11 = arith.constant 0 : index
    %10 = vector.load %arg6[%c0_10, %c0_11] : memref<1x128xf32, #tpu.memory_space<vmem>>, vector<1x128xf32>
    %11 = vector.broadcast %10 : vector<1x128xf32> to vector<8x128xf32>
    %12 = arith.addf %9, %11 : vector<8x128xf32>
    %cst_12 = arith.constant 0.000000e+00 : f32
    %13 = vector.broadcast %cst_12 : f32 to vector<8x128xf32>
    %14 = arith.maximumf %12, %13 : vector<8x128xf32>
    %15 = arith.truncf %14 : vector<8x128xf32> to vector<8x128xbf16>
    %c0_13 = arith.constant 0 : index
    %c0_14 = arith.constant 0 : index
    %16 = vector.load %arg7[%c0_13, %c0_14] : memref<128x128xbf16, #tpu.memory_space<vmem>>, vector<128x128xbf16>
    %cst_15 = arith.constant dense<0.000000e+00> : vector<8x128xf32>
    %17 = tpu.matmul %15, %16, %cst_15 {dimension_numbers = #tpu.dot_dimension_numbers<[1], [0], [0], [1], [0, 0, 1, 1], [], []>} : vector<8x128xbf16>, vector<128x128xbf16>, vector<8x128xf32> -> vector<8x128xf32>
    %c0_16 = arith.constant 0 : index
    %c0_17 = arith.constant 0 : index
    %18 = vector.load %arg8[%c0_16, %c0_17] : memref<1x128xf32, #tpu.memory_space<vmem>>, vector<1x128xf32>
    %19 = vector.broadcast %18 : vector<1x128xf32> to vector<8x128xf32>
    %20 = arith.addf %17, %19 : vector<8x128xf32>
    %21 = arith.truncf %6 : vector<8x128xf32> to vector<8x128xbf16>
    %c0_18 = arith.constant 0 : index
    %c0_19 = arith.constant 0 : index
    %22 = vector.load %arg9[%c0_18, %c0_19] : memref<128x128xbf16, #tpu.memory_space<vmem>>, vector<128x128xbf16>
    %cst_20 = arith.constant dense<0.000000e+00> : vector<8x128xf32>
    %23 = tpu.matmul %21, %22, %cst_20 {dimension_numbers = #tpu.dot_dimension_numbers<[1], [0], [0], [1], [0, 0, 1, 1], [], []>} : vector<8x128xbf16>, vector<128x128xbf16>, vector<8x128xf32> -> vector<8x128xf32>
    %24 = arith.truncf %20 : vector<8x128xf32> to vector<8x128xbf16>
    %c0_21 = arith.constant 0 : index
    %c0_22 = arith.constant 0 : index
    %25 = vector.load %arg10[%c0_21, %c0_22] : memref<128x128xbf16, #tpu.memory_space<vmem>>, vector<128x128xbf16>
    %cst_23 = arith.constant dense<0.000000e+00> : vector<8x128xf32>
    %26 = tpu.matmul %24, %25, %cst_23 {dimension_numbers = #tpu.dot_dimension_numbers<[1], [0], [0], [1], [0, 0, 1, 1], [], []>} : vector<8x128xbf16>, vector<128x128xbf16>, vector<8x128xf32> -> vector<8x128xf32>
    %27 = arith.addf %23, %26 : vector<8x128xf32>
    %c0_24 = arith.constant 0 : index
    %c0_25 = arith.constant 0 : index
    %28 = vector.load %arg11[%c0_24, %c0_25] : memref<1x128xf32, #tpu.memory_space<vmem>>, vector<1x128xf32>
    %29 = vector.broadcast %28 : vector<1x128xf32> to vector<8x128xf32>
    %30 = arith.addf %27, %29 : vector<8x128xf32>
    %c0_26 = arith.constant 0 : index
    %c0_27 = arith.constant 0 : index
    %31 = vector.load %arg12[%c0_26, %c0_27] : memref<8x128xf32, #tpu.memory_space<vmem>>, vector<8x128xf32>
    tpu.vector_store %arg12[%c0_26, %c0_27], %30 {strides = array<i32>} : memref<8x128xf32, #tpu.memory_space<vmem>>, vector<8x128xf32>,
    return
  }
  func.func @transform_0(%arg0: i32) -> (i32, i32) {
    %c0_i32 = arith.constant 0 : i32
    %c0_i32_0 = arith.constant 0 : i32
    return %arg0, %c0_i32 : i32, i32
  }
  func.func @transform_1(%arg0: i32) -> (i32, i32) {
    %c0_i32 = arith.constant 0 : i32
    %c0_i32_0 = arith.constant 0 : i32
    return %arg0, %c0_i32 : i32, i32
  }
  func.func @transform_2(%arg0: i32) -> (i32, i32) {
    %c0_i32 = arith.constant 0 : i32
    %c0_i32_0 = arith.constant 0 : i32
    %c0_i32_1 = arith.constant 0 : i32
    return %c0_i32, %c0_i32_0 : i32, i32
  }
  func.func @transform_3(%arg0: i32) -> (i32, i32) {
    %c0_i32 = arith.constant 0 : i32
    %c0_i32_0 = arith.constant 0 : i32
    %c0_i32_1 = arith.constant 0 : i32
    return %c0_i32, %c0_i32_0 : i32, i32
  }
  func.func @transform_4(%arg0: i32) -> (i32, i32) {
    %c0_i32 = arith.constant 0 : i32
    %c0_i32_0 = arith.constant 0 : i32
    %c0_i32_1 = arith.constant 0 : i32
    return %c0_i32, %c0_i32_0 : i32, i32
  }
  func.func @transform_5(%arg0: i32) -> (i32, i32) {
    %c0_i32 = arith.constant 0 : i32
    %c0_i32_0 = arith.constant 0 : i32
    %c0_i32_1 = arith.constant 0 : i32
    return %c0_i32, %c0_i32_0 : i32, i32
  }
  func.func @transform_6(%arg0: i32) -> (i32, i32) {
    %c0_i32 = arith.constant 0 : i32
    %c0_i32_0 = arith.constant 0 : i32
    %c0_i32_1 = arith.constant 0 : i32
    return %c0_i32, %c0_i32_0 : i32, i32
  }
  func.func @transform_7(%arg0: i32) -> (i32, i32) {
    %c0_i32 = arith.constant 0 : i32
    %c0_i32_0 = arith.constant 0 : i32
    %c0_i32_1 = arith.constant 0 : i32
    return %c0_i32, %c0_i32_0 : i32, i32
  }
  func.func @transform_8(%arg0: i32) -> (i32, i32) {
    %c0_i32 = arith.constant 0 : i32
    %c0_i32_0 = arith.constant 0 : i32
    %c0_i32_1 = arith.constant 0 : i32
    return %c0_i32, %c0_i32_0 : i32, i32
  }
  func.func @transform_9(%arg0: i32) -> (i32, i32) {
    %c0_i32 = arith.constant 0 : i32
    %c0_i32_0 = arith.constant 0 : i32
    %c0_i32_1 = arith.constant 0 : i32
    return %c0_i32, %c0_i32_0 : i32, i32
  }
  func.func @transform_10(%arg0: i32) -> (i32, i32) {
    %c0_i32 = arith.constant 0 : i32
    %c0_i32_0 = arith.constant 0 : i32
    %c0_i32_1 = arith.constant 0 : i32
    return %c0_i32, %c0_i32_0 : i32, i32
  }
  func.func @transform_11(%arg0: i32) -> (i32, i32) {
    %c0_i32 = arith.constant 0 : i32
    %c0_i32_0 = arith.constant 0 : i32
    return %arg0, %c0_i32 : i32, i32
  }
}

</mosaic_0001>

<llo_original>
// kernel: tpu_custom_call.1
$region0: #{tpu_custom_call.1}
  #allocation0 [shape = 'u32[]', space=smem, size = 0x4, offset = 0x4, fixed_abs, tag = 'smem constant byte address 0x4 - core index']
  #allocation1 [shape = 'u32[72,128]{1,0:T(1,128)}', space=vmem, size = 0x9000, scoped, tag = 'internal scratch']
  %s0 = inlined_call_operand.hbm [shape: bf16[8,128], index: 0, kind: input, shape index: {}]
  %s1 = inlined_call_operand.hbm [shape: bf16[8,128], index: 1, kind: input, shape index: {}]
  %s2 = inlined_call_operand.hbm [shape: bf16[128,128], index: 2, kind: input, shape index: {}]
  %s3 = inlined_call_operand.vmem [shape: f32[1,128], index: 3, kind: input, shape index: {}]
  %s4 = inlined_call_operand.hbm [shape: bf16[128,128], index: 4, kind: input, shape index: {}]
  %s5 = inlined_call_operand.vmem [shape: f32[1,128], index: 5, kind: input, shape index: {}]
  %s6 = inlined_call_operand.hbm [shape: bf16[128,128], index: 6, kind: input, shape index: {}]
  %s7 = inlined_call_operand.vmem [shape: f32[1,128], index: 7, kind: input, shape index: {}]
  %s8 = inlined_call_operand.hbm [shape: bf16[128,128], index: 8, kind: input, shape index: {}]
  %s9 = inlined_call_operand.hbm [shape: bf16[128,128], index: 9, kind: input, shape index: {}]
  %s10 = inlined_call_operand.vmem [shape: f32[1,128], index: 10, kind: input, shape index: {}]
  %s11 = inlined_call_operand.hbm [shape: f32[8,128], index: 11, kind: output, shape index: {}]
  %s12 = sld [smem:[#allocation0]]
  $region82: #{tpu_custom_call.1} parent=0
    _
  %s14 = ssub.s32 1, %s12
  %s15 = scalar_select 0, %s14, %s12
  $region1: #{tpu_custom_call.1} parent=0
    #allocation2 [shape = 'u8[2048]{0}', space=vmem, size = 0x800, scoped, tag = 'input window, operand 0, single buffered']
    #allocation3 [shape = 's32[1]{0}', space=sflag, size = 0x4, scoped, tag = 'scoped memory for tpu_custom_call.1']
    #allocation4 [shape = 's32[1]{0}', space=sflag, size = 0x4, scoped, tag = 'scoped memory for tpu_custom_call.1']
    #allocation5 [shape = 'u8[2048]{0}', space=vmem, size = 0x800, scoped, tag = 'input window, operand 1, single buffered']
    #allocation6 [shape = 's32[1]{0}', space=sflag, size = 0x4, scoped, tag = 'scoped memory for tpu_custom_call.1']
    #allocation7 [shape = 'u8[32768]{0}', space=vmem, size = 0x8000, scoped, tag = 'input window, operand 2, single buffered']
    #allocation8 [shape = 'u8[32768]{0}', space=vmem, size = 0x8000, scoped, tag = 'input window, operand 4, single buffered']
    #allocation9 [shape = 's32[1]{0}', space=sflag, size = 0x4, scoped, tag = 'scoped memory for tpu_custom_call.1']
    #allocation10 [shape = 'u8[32768]{0}', space=vmem, size = 0x8000, scoped, tag = 'input window, operand 6, single buffered']
    #allocation11 [shape = 'u8[32768]{0}', space=vmem, size = 0x8000, scoped, tag = 'input window, operand 8, single buffered']
    #allocation12 [shape = 's32[1]{0}', space=sflag, size = 0x4, scoped, tag = 'scoped memory for tpu_custom_call.1']
    #allocation13 [shape = 'u8[32768]{0}', space=vmem, size = 0x8000, scoped, tag = 'input window, operand 9, single buffered']
    #allocation14 [shape = 'u8[4096]{0}', space=vmem, size = 0x1000, scoped, tag = 'output window, operand 0, single buffered']
    %16 = vsyncpa [#allocation3], 0
    %17 = vsyncpa [#allocation6], 0
    %18 = vsyncpa [#allocation9], 0
    %19 = vsyncpa [#allocation12], 0
    %20 = vsyncpa [#allocation4], 0
    // Predicated region
    $region2: #{tpu_custom_call.1} parent=1 // pred_check
      _
    $region3: #{tpu_custom_call.1} parent=1 // pred_check_branch
      %22 = sbr.rel (0) target = $region5
    $region4: #{tpu_custom_call.1} parent=1 // pred_region
      %24 = vsyncadd [#allocation3], 0
      %s26 = sshll.u32 %s0, 4
      %s27 = int_to_ptr.hbm [resolvable:$true] %s26
      %s28 = sshll.u32 [#allocation2], 4
      %s29 = int_to_ptr.vmem [resolvable:$true] %s28
      %31 = dma.hbm_to_vmem [thread:$0]  %s27, 64, %s29, [#allocation3]
    $region5: #{tpu_custom_call.1} parent=1 // pred_fallthru
      _
    // Predicated region
    $region6: #{tpu_custom_call.1} parent=1 // pred_check
      _
    $region7: #{tpu_custom_call.1} parent=1 // pred_check_branch
      %33 = sbr.rel (0) target = $region9
    $region8: #{tpu_custom_call.1} parent=1 // pred_region
      %35 = vsyncadd [#allocation6], 0
      %s37 = sshll.u32 %s1, 4
      %s38 = int_to_ptr.hbm [resolvable:$true] %s37
      %s39 = sshll.u32 [#allocation5], 4
      %s40 = int_to_ptr.vmem [resolvable:$true] %s39
      %42 = dma.hbm_to_vmem [thread:$0]  %s38, 64, %s40, [#allocation6]
    $region9: #{tpu_custom_call.1} parent=1 // pred_fallthru
      _
    // Predicated region
    $region10: #{tpu_custom_call.1} parent=1 // pred_check
      _
    $region11: #{tpu_custom_call.1} parent=1 // pred_check_branch
      %44 = sbr.rel (0) target = $region13
    $region12: #{tpu_custom_call.1} parent=1 // pred_region
      %46 = vsyncadd [#allocation6], 0
      %s47 = sshll.u32 %s2, 4
      %s48 = int_to_ptr.hbm [resolvable:$true] %s47
      %s49 = sshll.u32 [#allocation7], 4
      %s50 = int_to_ptr.vmem [resolvable:$true] %s49
      %55 = dma.hbm_to_vmem [thread:$0]  %s48, 1024, %s50, [#allocation6], 64, 64, 4
    $region13: #{tpu_custom_call.1} parent=1 // pred_fallthru
      _
    // Predicated region
    $region14: #{tpu_custom_call.1} parent=1 // pred_check
      _
    $region15: #{tpu_custom_call.1} parent=1 // pred_check_branch
      %57 = sbr.rel (0) target = $region17
    $region16: #{tpu_custom_call.1} parent=1 // pred_region
      _
    $region17: #{tpu_custom_call.1} parent=1 // pred_fallthru
      _
    // Predicated region
    $region18: #{tpu_custom_call.1} parent=1 // pred_check
      _
    $region19: #{tpu_custom_call.1} parent=1 // pred_check_branch
      %59 = sbr.rel (0) target = $region21
    $region20: #{tpu_custom_call.1} parent=1 // pred_region
      %61 = vsyncadd [#allocation9], 0
      %s62 = sshll.u32 %s4, 4
      %s63 = int_to_ptr.hbm [resolvable:$true] %s62
      %s64 = sshll.u32 [#allocation8], 4
      %s65 = int_to_ptr.vmem [resolvable:$true] %s64
      %70 = dma.hbm_to_vmem [thread:$0]  %s63, 1024, %s65, [#allocation9], 64, 64, 4
    $region21: #{tpu_custom_call.1} parent=1 // pred_fallthru
      _
    // Predicated region
    $region22: #{tpu_custom_call.1} parent=1 // pred_check
      _
    $region23: #{tpu_custom_call.1} parent=1 // pred_check_branch
      %72 = sbr.rel (0) target = $region25
    $region24: #{tpu_custom_call.1} parent=1 // pred_region
      _
    $region25: #{tpu_custom_call.1} parent=1 // pred_fallthru
      _
    // Predicated region
    $region26: #{tpu_custom_call.1} parent=1 // pred_check
      _
    $region27: #{tpu_custom_call.1} parent=1 // pred_check_branch
      %74 = sbr.rel (0) target = $region29
    $region28: #{tpu_custom_call.1} parent=1 // pred_region
      %76 = vsyncadd [#allocation9], 0
      %s77 = sshll.u32 %s6, 4
      %s78 = int_to_ptr.hbm [resolvable:$true] %s77
      %s79 = sshll.u32 [#allocation10], 4
      %s80 = int_to_ptr.vmem [resolvable:$true] %s79
      %85 = dma.hbm_to_vmem [thread:$0]  %s78, 1024, %s80, [#allocation9], 64, 64, 4
    $region29: #{tpu_custom_call.1} parent=1 // pred_fallthru
      _
    // Predicated region
    $region30: #{tpu_custom_call.1} parent=1 // pred_check
      _
    $region31: #{tpu_custom_call.1} parent=1 // pred_check_branch
      %87 = sbr.rel (0) target = $region33
    $region32: #{tpu_custom_call.1} parent=1 // pred_region
      _
    $region33: #{tpu_custom_call.1} parent=1 // pred_fallthru
      _
    // Predicated region
    $region34: #{tpu_custom_call.1} parent=1 // pred_check
      _
    $region35: #{tpu_custom_call.1} parent=1 // pred_check_branch
      %89 = sbr.rel (0) target = $region37
    $region36: #{tpu_custom_call.1} parent=1 // pred_region
      %91 = vsyncadd [#allocation12], 0
      %s92 = sshll.u32 %s8, 4
      %s93 = int_to_ptr.hbm [resolvable:$true] %s92
      %s94 = sshll.u32 [#allocation11], 4
      %s95 = int_to_ptr.vmem [resolvable:$true] %s94
      %100 = dma.hbm_to_vmem [thread:$0]  %s93, 1024, %s95, [#allocation12], 64, 64, 4
    $region37: #{tpu_custom_call.1} parent=1 // pred_fallthru
      _
    // Predicated region
    $region38: #{tpu_custom_call.1} parent=1 // pred_check
      _
    $region39: #{tpu_custom_call.1} parent=1 // pred_check_branch
      %102 = sbr.rel (0) target = $region41
    $region40: #{tpu_custom_call.1} parent=1 // pred_region
      %104 = vsyncadd [#allocation12], 0
      %s105 = sshll.u32 %s9, 4
      %s106 = int_to_ptr.hbm [resolvable:$true] %s105
      %s107 = sshll.u32 [#allocation13], 4
      %s108 = int_to_ptr.vmem [resolvable:$true] %s107
      %113 = dma.hbm_to_vmem [thread:$0]  %s106, 1024, %s108, [#allocation12], 64, 64, 4
    $region41: #{tpu_custom_call.1} parent=1 // pred_fallthru
      _
    // Predicated region
    $region42: #{tpu_custom_call.1} parent=1 // pred_check
      _
    $region43: #{tpu_custom_call.1} parent=1 // pred_check_branch
      %115 = sbr.rel (0) target = $region45
    $region44: #{tpu_custom_call.1} parent=1 // pred_region
      _
    $region45: #{tpu_custom_call.1} parent=1 // pred_fallthru
      _
    // Predicated region
    $region46: #{tpu_custom_call.1} parent=1 // pred_check
      _
    $region47: #{tpu_custom_call.1} parent=1 // pred_check_branch
      %117 = sbr.rel (0) target = $region49
    $region48: #{tpu_custom_call.1} parent=1 // pred_region
      %119 = dma.done [#allocation3], 64
    $region49: #{tpu_custom_call.1} parent=1 // pred_fallthru
      _
    // Predicated region
    $region50: #{tpu_custom_call.1} parent=1 // pred_check
      _
    $region51: #{tpu_custom_call.1} parent=1 // pred_check_branch
      %121 = sbr.rel (0) target = $region53
    $region52: #{tpu_custom_call.1} parent=1 // pred_region
      %123 = dma.done [#allocation6], 64
    $region53: #{tpu_custom_call.1} parent=1 // pred_fallthru
      _
    // Predicated region
    $region54: #{tpu_custom_call.1} parent=1 // pred_check
      _
    $region55: #{tpu_custom_call.1} parent=1 // pred_check_branch
      %125 = sbr.rel (0) target = $region57
    $region56: #{tpu_custom_call.1} parent=1 // pred_region
      %127 = dma.done [#allocation6], 1024
    $region57: #{tpu_custom_call.1} parent=1 // pred_fallthru
      _
    // Predicated region
    $region58: #{tpu_custom_call.1} parent=1 // pred_check
      _
    $region59: #{tpu_custom_call.1} parent=1 // pred_check_branch
      %129 = sbr.rel (0) target = $region61
    $region60: #{tpu_custom_call.1} parent=1 // pred_region
      %131 = dma.done [#allocation9], 1024
    $region61: #{tpu_custom_call.1} parent=1 // pred_fallthru
      _
    // Predicated region
    $region62: #{tpu_custom_call.1} parent=1 // pred_check
      _
    $region63: #{tpu_custom_call.1} parent=1 // pred_check_branch
      %133 = sbr.rel (0) target = $region65
    $region64: #{tpu_custom_call.1} parent=1 // pred_region
      %135 = dma.done [#allocation9], 1024
    $region65: #{tpu_custom_call.1} parent=1 // pred_fallthru
      _
    // Predicated region
    $region66: #{tpu_custom_call.1} parent=1 // pred_check
      _
    $region67: #{tpu_custom_call.1} parent=1 // pred_check_branch
      %137 = sbr.rel (0) target = $region69
    $region68: #{tpu_custom_call.1} parent=1 // pred_region
      %139 = dma.done [#allocation12], 1024
    $region69: #{tpu_custom_call.1} parent=1 // pred_fallthru
      _
    // Predicated region
    $region70: #{tpu_custom_call.1} parent=1 // pred_check
      _
    $region71: #{tpu_custom_call.1} parent=1 // pred_check_branch
      %141 = sbr.rel (0) target = $region73
    $region72: #{tpu_custom_call.1} parent=1 // pred_region
      %143 = dma.done [#allocation12], 1024
    $region73: #{tpu_custom_call.1} parent=1 // pred_fallthru
      _
    %v144 = vld [vmem:[#allocation2] sm:$0xf]
    %v145 = vld [vmem:[#allocation7] sm:$0xf]
    %v146 = vld [vmem:[#allocation7 + $0x4] sm:$0xf]
    %v147 = vld [vmem:[#allocation7 + $0x8] sm:$0xf]
    %v148 = vld [vmem:[#allocation7 + $0xc] sm:$0xf]
    %v149 = vld [vmem:[#allocation7 + $0x10] sm:$0xf]
    %v150 = vld [vmem:[#allocation7 + $0x14] sm:$0xf]
    %v151 = vld [vmem:[#allocation7 + $0x18] sm:$0xf]
    %v152 = vld [vmem:[#allocation7 + $0x1c] sm:$0xf]
    %v153 = vld [vmem:[#allocation7 + $0x20] sm:$0xf]
    %v154 = vld [vmem:[#allocation7 + $0x24] sm:$0xf]
    %v155 = vld [vmem:[#allocation7 + $0x28] sm:$0xf]
    %v156 = vld [vmem:[#allocation7 + $0x2c] sm:$0xf]
    %v157 = vld [vmem:[#allocation7 + $0x30] sm:$0xf]
    %v158 = vld [vmem:[#allocation7 + $0x34] sm:$0xf]
    %v159 = vld [vmem:[#allocation7 + $0x38] sm:$0xf]
    %v160 = vld [vmem:[#allocation7 + $0x3c] sm:$0xf]
    %v161 = vld [vmem:[%s3] sm:$0x1]
    %v163 = vperm.slane %v161, 0
    %v181 = vunpack.c.l.b16 %v145
    %v182 = vunpack.c.l.b16 %v146
    %v183 = vunpack.c.l.b16 %v147
    %v184 = vunpack.c.l.b16 %v148
    %v185 = vunpack.c.l.b16 %v149
    %v186 = vunpack.c.l.b16 %v150
    %v187 = vunpack.c.l.b16 %v151
    %v188 = vunpack.c.l.b16 %v152
    %v189 = vunpack.c.l.b16 %v153
    %v190 = vunpack.c.l.b16 %v154
    %v191 = vunpack.c.l.b16 %v155
    %v192 = vunpack.c.l.b16 %v156
    %v193 = vunpack.c.l.b16 %v157
    %v194 = vunpack.c.l.b16 %v158
    %v195 = vunpack.c.l.b16 %v159
    %v196 = vunpack.c.l.b16 %v160
    %v197 = vpack.c.b16 %v182, %v181
    %v198 = vpack.c.b16 %v184, %v183
    %v199 = vpack.c.b16 %v186, %v185
    %v200 = vpack.c.b16 %v188, %v187
    %v201 = vpack.c.b16 %v190, %v189
    %v202 = vpack.c.b16 %v192, %v191
    %v203 = vpack.c.b16 %v194, %v193
    %v204 = vpack.c.b16 %v196, %v195
    %213 = vmatpush.bf16.msra.mxu0 %v204
    %214 = vmatpush.bf16.msra.mxu0 %v203
    %215 = vmatpush.bf16.msra.mxu0 %v202
    %216 = vmatpush.bf16.msra.mxu0 %v201
    %217 = vmatpush.bf16.msra.mxu0 %v200
    %218 = vmatpush.bf16.msra.mxu0 %v199
    %219 = vmatpush.bf16.msra.mxu0 %v198
    %220 = vmatpush.bf16.msra.mxu0 %v197
    %221 = vmatmul.bf16.gmra.mxu0 %v144
    %v222 = vpop.f32.mrf.mxu0
    %v223 = vadd.f32 %v163, %v222
    %v224 = vpop.f32.mrf.mxu0
    %225 = vdwg.mxu0
    %v226 = vtanh.pop %v223
    %v227 = vld [vmem:[#allocation5] sm:$0xf]
    %v228 = vld [vmem:[#allocation8] sm:$0xf]
    %v229 = vld [vmem:[#allocation8 + $0x4] sm:$0xf]
    %v230 = vld [vmem:[#allocation8 + $0x8] sm:$0xf]
    %v231 = vld [vmem:[#allocation8 + $0xc] sm:$0xf]
    %v232 = vld [vmem:[#allocation8 + $0x10] sm:$0xf]
    %v233 = vld [vmem:[#allocation8 + $0x14] sm:$0xf]
    %v234 = vld [vmem:[#allocation8 + $0x18] sm:$0xf]
    %v235 = vld [vmem:[#allocation8 + $0x1c] sm:$0xf]
    %v236 = vld [vmem:[#allocation8 + $0x20] sm:$0xf]
    %v237 = vld [vmem:[#allocation8 + $0x24] sm:$0xf]
    %v238 = vld [vmem:[#allocation8 + $0x28] sm:$0xf]
    %v239 = vld [vmem:[#allocation8 + $0x2c] sm:$0xf]
    %v240 = vld [vmem:[#allocation8 + $0x30] sm:$0xf]
    %v241 = vld [vmem:[#allocation8 + $0x34] sm:$0xf]
    %v242 = vld [vmem:[#allocation8 + $0x38] sm:$0xf]
    %v243 = vld [vmem:[#allocation8 + $0x3c] sm:$0xf]
    %v244 = vld [vmem:[%s5] sm:$0x1]
    %v246 = vperm.slane %v244, 0
    %v264 = vunpack.c.l.b16 %v228
    %v265 = vunpack.c.l.b16 %v229
    %v266 = vunpack.c.l.b16 %v230
    %v267 = vunpack.c.l.b16 %v231
    %v268 = vunpack.c.l.b16 %v232
    %v269 = vunpack.c.l.b16 %v233
    %v270 = vunpack.c.l.b16 %v234
    %v271 = vunpack.c.l.b16 %v235
    %v272 = vunpack.c.l.b16 %v236
    %v273 = vunpack.c.l.b16 %v237
    %v274 = vunpack.c.l.b16 %v238
    %v275 = vunpack.c.l.b16 %v239
    %v276 = vunpack.c.l.b16 %v240
    %v277 = vunpack.c.l.b16 %v241
    %v278 = vunpack.c.l.b16 %v242
    %v279 = vunpack.c.l.b16 %v243
    %v280 = vpack.c.b16 %v265, %v264
    %v281 = vpack.c.b16 %v267, %v266
    %v282 = vpack.c.b16 %v269, %v268
    %v283 = vpack.c.b16 %v271, %v270
    %v284 = vpack.c.b16 %v273, %v272
    %v285 = vpack.c.b16 %v275, %v274
    %v286 = vpack.c.b16 %v277, %v276
    %v287 = vpack.c.b16 %v279, %v278
    %296 = vmatpush.bf16.msra.mxu0 %v287
    %297 = vmatpush.bf16.msra.mxu0 %v286
    %298 = vmatpush.bf16.msra.mxu0 %v285
    %299 = vmatpush.bf16.msra.mxu0 %v284
    %300 = vmatpush.bf16.msra.mxu0 %v283
    %301 = vmatpush.bf16.msra.mxu0 %v282
    %302 = vmatpush.bf16.msra.mxu0 %v281
    %303 = vmatpush.bf16.msra.mxu0 %v280
    %304 = vmatmul.bf16.gmra.mxu0 %v227
    %v305 = vpop.f32.mrf.mxu0
    %v306 = vadd.f32 %v246, %v305
    %v307 = vpop.f32.mrf.mxu0
    %308 = vdwg.mxu0
    %v309 = vmax.f32 %v306, 0.0
    %v310 = vpack.c.bf16 %v309, %v309
    %v311 = vld [vmem:[#allocation10] sm:$0xf]
    %v312 = vld [vmem:[#allocation10 + $0x4] sm:$0xf]
    %v313 = vld [vmem:[#allocation10 + $0x8] sm:$0xf]
    %v314 = vld [vmem:[#allocation10 + $0xc] sm:$0xf]
    %v315 = vld [vmem:[#allocation10 + $0x10] sm:$0xf]
    %v316 = vld [vmem:[#allocation10 + $0x14] sm:$0xf]
    %v317 = vld [vmem:[#allocation10 + $0x18] sm:$0xf]
    %v318 = vld [vmem:[#allocation10 + $0x1c] sm:$0xf]
    %v319 = vld [vmem:[#allocation10 + $0x20] sm:$0xf]
    %v320 = vld [vmem:[#allocation10 + $0x24] sm:$0xf]
    %v321 = vld [vmem:[#allocation10 + $0x28] sm:$0xf]
    %v322 = vld [vmem:[#allocation10 + $0x2c] sm:$0xf]
    %v323 = vld [vmem:[#allocation10 + $0x30] sm:$0xf]
    %v324 = vld [vmem:[#allocation10 + $0x34] sm:$0xf]
    %v325 = vld [vmem:[#allocation10 + $0x38] sm:$0xf]
    %v326 = vld [vmem:[#allocation10 + $0x3c] sm:$0xf]
    %v327 = vld [vmem:[%s7] sm:$0x1]
    %v329 = vperm.slane %v327, 0
    %v347 = vunpack.c.l.b16 %v311
    %v348 = vunpack.c.l.b16 %v312
    %v349 = vunpack.c.l.b16 %v313
    %v350 = vunpack.c.l.b16 %v314
    %v351 = vunpack.c.l.b16 %v315
    %v352 = vunpack.c.l.b16 %v316
    %v353 = vunpack.c.l.b16 %v317
    %v354 = vunpack.c.l.b16 %v318
    %v355 = vunpack.c.l.b16 %v319
    %v356 = vunpack.c.l.b16 %v320
    %v357 = vunpack.c.l.b16 %v321
    %v358 = vunpack.c.l.b16 %v322
    %v359 = vunpack.c.l.b16 %v323
    %v360 = vunpack.c.l.b16 %v324
    %v361 = vunpack.c.l.b16 %v325
    %v362 = vunpack.c.l.b16 %v326
    %v363 = vpack.c.b16 %v348, %v347
    %v364 = vpack.c.b16 %v350, %v349
    %v365 = vpack.c.b16 %v352, %v351
    %v366 = vpack.c.b16 %v354, %v353
    %v367 = vpack.c.b16 %v356, %v355
    %v368 = vpack.c.b16 %v358, %v357
    %v369 = vpack.c.b16 %v360, %v359
    %v370 = vpack.c.b16 %v362, %v361
    %379 = vmatpush.bf16.msra.mxu0 %v370
    %380 = vmatpush.bf16.msra.mxu0 %v369
    %381 = vmatpush.bf16.msra.mxu0 %v368
    %382 = vmatpush.bf16.msra.mxu0 %v367
    %383 = vmatpush.bf16.msra.mxu0 %v366
    %384 = vmatpush.bf16.msra.mxu0 %v365
    %385 = vmatpush.bf16.msra.mxu0 %v364
    %386 = vmatpush.bf16.msra.mxu0 %v363
    %387 = vmatmul.bf16.gmra.mxu0 %v310
    %v388 = vpop.f32.mrf.mxu0
    %v389 = vadd.f32 %v329, %v388
    %v390 = vpop.f32.mrf.mxu0
    %391 = vdwg.mxu0
    %v392 = vpack.c.bf16 %v226, %v226
    %v393 = vld [vmem:[#allocation11] sm:$0xf]
    %v394 = vld [vmem:[#allocation11 + $0x4] sm:$0xf]
    %v395 = vld [vmem:[#allocation11 + $0x8] sm:$0xf]
    %v396 = vld [vmem:[#allocation11 + $0xc] sm:$0xf]
    %v397 = vld [vmem:[#allocation11 + $0x10] sm:$0xf]
    %v398 = vld [vmem:[#allocation11 + $0x14] sm:$0xf]
    %v399 = vld [vmem:[#allocation11 + $0x18] sm:$0xf]
    %v400 = vld [vmem:[#allocation11 + $0x1c] sm:$0xf]
    %v401 = vld [vmem:[#allocation11 + $0x20] sm:$0xf]
    %v402 = vld [vmem:[#allocation11 + $0x24] sm:$0xf]
    %v403 = vld [vmem:[#allocation11 + $0x28] sm:$0xf]
    %v404 = vld [vmem:[#allocation11 + $0x2c] sm:$0xf]
    %v405 = vld [vmem:[#allocation11 + $0x30] sm:$0xf]
    %v406 = vld [vmem:[#allocation11 + $0x34] sm:$0xf]
    %v407 = vld [vmem:[#allocation11 + $0x38] sm:$0xf]
    %v408 = vld [vmem:[#allocation11 + $0x3c] sm:$0xf]
    %v409 = vpack.c.bf16 %v389, %v389
    %v410 = vld [vmem:[#allocation13] sm:$0xf]
    %v411 = vld [vmem:[#allocation13 + $0x4] sm:$0xf]
    %v412 = vld [vmem:[#allocation13 + $0x8] sm:$0xf]
    %v413 = vld [vmem:[#allocation13 + $0xc] sm:$0xf]
    %v414 = vld [vmem:[#allocation13 + $0x10] sm:$0xf]
    %v415 = vld [vmem:[#allocation13 + $0x14] sm:$0xf]
    %v416 = vld [vmem:[#allocation13 + $0x18] sm:$0xf]
    %v417 = vld [vmem:[#allocation13 + $0x1c] sm:$0xf]
    %v418 = vld [vmem:[#allocation13 + $0x20] sm:$0xf]
    %v419 = vld [vmem:[#allocation13 + $0x24] sm:$0xf]
    %v420 = vld [vmem:[#allocation13 + $0x28] sm:$0xf]
    %v421 = vld [vmem:[#allocation13 + $0x2c] sm:$0xf]
    %v422 = vld [vmem:[#allocation13 + $0x30] sm:$0xf]
    %v423 = vld [vmem:[#allocation13 + $0x34] sm:$0xf]
    %v424 = vld [vmem:[#allocation13 + $0x38] sm:$0xf]
    %v425 = vld [vmem:[#allocation13 + $0x3c] sm:$0xf]
    %v442 = vunpack.c.l.b16 %v410
    %v443 = vunpack.c.l.b16 %v411
    %v444 = vunpack.c.l.b16 %v412
    %v445 = vunpack.c.l.b16 %v413
    %v446 = vunpack.c.l.b16 %v414
    %v447 = vunpack.c.l.b16 %v415
    %v448 = vunpack.c.l.b16 %v416
    %v449 = vunpack.c.l.b16 %v417
    %v450 = vunpack.c.l.b16 %v418
    %v451 = vunpack.c.l.b16 %v419
    %v452 = vunpack.c.l.b16 %v420
    %v453 = vunpack.c.l.b16 %v421
    %v454 = vunpack.c.l.b16 %v422
    %v455 = vunpack.c.l.b16 %v423
    %v456 = vunpack.c.l.b16 %v424
    %v457 = vunpack.c.l.b16 %v425
    %v458 = vpack.c.b16 %v443, %v442
    %v459 = vpack.c.b16 %v445, %v444
    %v460 = vpack.c.b16 %v447, %v446
    %v461 = vpack.c.b16 %v449, %v448
    %v462 = vpack.c.b16 %v451, %v450
    %v463 = vpack.c.b16 %v453, %v452
    %v464 = vpack.c.b16 %v455, %v454
    %v465 = vpack.c.b16 %v457, %v456
    %474 = vmatpush.bf16.msra.mxu0 %v465
    %475 = vmatpush.bf16.msra.mxu0 %v464
    %476 = vmatpush.bf16.msra.mxu0 %v463
    %477 = vmatpush.bf16.msra.mxu0 %v462
    %478 = vmatpush.bf16.msra.mxu0 %v461
    %479 = vmatpush.bf16.msra.mxu0 %v460
    %480 = vmatpush.bf16.msra.mxu0 %v459
    %481 = vmatpush.bf16.msra.mxu0 %v458
    %482 = vmatmul.bf16.gmra.mxu0 %v409
    %v483 = vpop.f32.mrf.mxu0
    %v484 = vadd.f32 0.0, %v483
    %v485 = vpop.f32.mrf.mxu0
    %486 = vdwg.mxu0
    %v503 = vunpack.c.l.b16 %v393
    %v504 = vunpack.c.l.b16 %v394
    %v505 = vunpack.c.l.b16 %v395
    %v506 = vunpack.c.l.b16 %v396
    %v507 = vunpack.c.l.b16 %v397
    %v508 = vunpack.c.l.b16 %v398
    %v509 = vunpack.c.l.b16 %v399
    %v510 = vunpack.c.l.b16 %v400
    %v511 = vunpack.c.l.b16 %v401
    %v512 = vunpack.c.l.b16 %v402
    %v513 = vunpack.c.l.b16 %v403
    %v514 = vunpack.c.l.b16 %v404
    %v515 = vunpack.c.l.b16 %v405
    %v516 = vunpack.c.l.b16 %v406
    %v517 = vunpack.c.l.b16 %v407
    %v518 = vunpack.c.l.b16 %v408
    %v519 = vpack.c.b16 %v504, %v503
    %v520 = vpack.c.b16 %v506, %v505
    %v521 = vpack.c.b16 %v508, %v507
    %v522 = vpack.c.b16 %v510, %v509
    %v523 = vpack.c.b16 %v512, %v511
    %v524 = vpack.c.b16 %v514, %v513
    %v525 = vpack.c.b16 %v516, %v515
    %v526 = vpack.c.b16 %v518, %v517
    %535 = vmatpush.bf16.msra.mxu0 %v526
    %536 = vmatpush.bf16.msra.mxu0 %v525
    %537 = vmatpush.bf16.msra.mxu0 %v524
    %538 = vmatpush.bf16.msra.mxu0 %v523
    %539 = vmatpush.bf16.msra.mxu0 %v522
    %540 = vmatpush.bf16.msra.mxu0 %v521
    %541 = vmatpush.bf16.msra.mxu0 %v520
    %542 = vmatpush.bf16.msra.mxu0 %v519
    %543 = vmatmul.bf16.gmra.mxu0 %v392
    %v544 = vpop.f32.mrf.mxu0
    %v545 = vadd.f32 %v484, %v544
    %v546 = vpop.f32.mrf.mxu0
    %547 = vdwg.mxu0
    %v548 = vld [vmem:[%s10] sm:$0x1]
    %v550 = vperm.slane %v548, 0
    %v552 = vadd.f32 %v545, %v550
    %553 = vst [vmem:[#allocation14] sm:$0xff] %v552
    // Predicated region
    $region74: #{tpu_custom_call.1} parent=1 // pred_check
      _
    $region75: #{tpu_custom_call.1} parent=1 // pred_check_branch
      %555 = sbr.rel (0) target = $region77
    $region76: #{tpu_custom_call.1} parent=1 // pred_region
      %557 = vsyncadd [#allocation4], 0
      %s559 = sshll.u32 [#allocation14], 4
      %s560 = int_to_ptr.vmem [resolvable:$true] %s559
      %s561 = sshll.u32 %s11, 4
      %s562 = int_to_ptr.hbm [resolvable:$true] %s561
      %564 = dma.vmem_to_hbm [thread:$0]  %s560, 128, %s562, [#allocation4]
    $region77: #{tpu_custom_call.1} parent=1 // pred_fallthru
      _
    // Predicated region
    $region78: #{tpu_custom_call.1} parent=1 // pred_check
      _
    $region79: #{tpu_custom_call.1} parent=1 // pred_check_branch
      %566 = sbr.rel (0) target = $region81
    $region80: #{tpu_custom_call.1} parent=1 // pred_region
      %568 = dma.done [#allocation4], 128
    $region81: #{tpu_custom_call.1} parent=1 // pred_fallthru
      _
    %569 = vsyncpa [#allocation3], 1
    %570 = vsyncpa [#allocation6], 1
    %571 = vsyncpa [#allocation9], 1
    %572 = vsyncpa [#allocation12], 1
    %573 = vsyncpa [#allocation4], 1

</llo_original>
